<compile_context>
chip_gen: v7x
topology: tpu7x:2x2x1
jax: 0.10.0
libtpu: 0.0.40
codegen_flags: <defaults>
</compile_context>

<pallas_src>
import functools

import jax
import jax.numpy as jnp
import numpy as np
from jax.experimental import pallas as pl
from jax.experimental.pallas import tpu as pltpu


# ----------------------------------------------------------------------------
# One-time probe: resolve pltpu.roll's rotation convention (cached per process)
# so the main kernel uses a single static-direction roll per tap.
# ----------------------------------------------------------------------------
def _roll_probe_kernel(x_ref, o_ref):
    o_ref[...] = pltpu.roll(x_ref[...], 1, axis=1)


@functools.lru_cache(maxsize=1)
def _roll_shift_sign():
    n = 128
    x = jnp.arange(n, dtype=jnp.float32).reshape(1, n)
    y = np.asarray(pl.pallas_call(
        _roll_probe_kernel,
        out_shape=jax.ShapeDtypeStruct((1, n), jnp.float32))(x))
    # jnp.roll convention (out[i] = in[(i - shift) % n]) -> out[0] == n - 1,
    # in which case lane_shift(v, off) must roll by -off.
    return -1 if int(y[0, 0]) == n - 1 else 1


# ----------------------------------------------------------------------------
# Fused Block kernel: grid over flow steps, slab resident in out_ref.
#   step = ActNorm -> conv/BN(batch stats)/ReLU stack -> conv -> coupling
# ----------------------------------------------------------------------------
def _block_kernel(x_ref, *rest, n_layers, H, W, half, roll_sign):
    n_param = 4 * (n_layers - 1) + 2
    param_refs = rest[:n_param]
    out_ref = rest[n_param]            # (C, N) resident slab, carried across steps
    ld_lane_ref = rest[n_param + 1]    # (1, N) accumulated per-lane sum of log|s|
    ld_act_ref = rest[n_param + 2]     # (1, 1) accumulated ActNorm logdet

    step = pl.program_id(0)
    C, N = out_ref.shape
    hw = H * W

    @pl.when(step == 0)
    def _():
        out_ref[...] = x_ref[...]
        ld_lane_ref[...] = jnp.zeros_like(ld_lane_ref)
        ld_act_ref[...] = jnp.zeros_like(ld_act_ref)

    # ---- ActNorm (data-dependent init path of the first forward) ------------
    # TODO(synk): the frozen-parameter path of later PyTorch calls
    #             (initialized == 1) is not modeled.
    x = out_ref[...]
    mean = jnp.sum(x, axis=1, keepdims=True) * (1.0 / N)
    d = x - mean
    var = jnp.sum(d * d, axis=1, keepdims=True) * (1.0 / (N - 1))  # unbiased, two-pass
    scale = 1.0 / (jnp.sqrt(var) + 1e-6)
    y = scale * d                                   # loc = -mean (use_shift=False)
    ld_act_ref[...] += float(hw) * jnp.sum(jnp.log(jnp.abs(scale)), keepdims=True)
    out_ref[...] = y

    # ---- coupling halves: mask_swap = bool(flow_index % 2) -------------------
    swap = step % 2
    a_off = swap * half                # conv-input / passthrough rows
    b_off = half - a_off               # affine rows (read & written in place)
    if half % 8 == 0:
        a_off = pl.multiple_of(a_off, 8)
        b_off = pl.multiple_of(b_off, 8)
    in_a = out_ref[pl.ds(a_off, half), :]

    # ---- 3x3 tap lane geometry (shared by all conv layers in this step) -----
    pos = jax.lax.broadcasted_iota(jnp.int32, (1, N), 1)  # lane = b*H*W + y*W + x
    yy = (pos % hw) // W
    xx = pos % W
    taps = []
    for dy in (-1, 0, 1):
        for dx in (-1, 0, 1):
            m = (yy + dy >= 0) & (yy + dy < H) & (xx + dx >= 0) & (xx + dx < W)
            taps.append((dy * W + dx, m))

    def lane_shift(v, off):
        # sh[:, p] = v[:, (p + off) % N]; wrap lanes are always border-masked.
        if off == 0:
            return v
        return pltpu.roll(v, (roll_sign * off) % N, axis=1)

    def conv3x3(h, w_ref, b_ref):
        # h: (Cin, N) f32, w_ref: (Cout, 9*Cin) bf16, b_ref: (Cout, 1) f32.
        pieces = []
        for off, m in taps:
            if off == 0:
                pieces.append(h.astype(jnp.bfloat16))
            else:
                # mask in f32 (no bf16 VALU on v5e), cast per tap before concat
                pieces.append(jnp.where(m, lane_shift(h, off), 0.0)
                              .astype(jnp.bfloat16))
        xs = jnp.concatenate(pieces, axis=0)                 # (9*Cin, N) bf16
        acc = jnp.dot(w_ref[...], xs, preferred_element_type=jnp.float32)
        return acc + b_ref[...]                              # (Cout, N) f32

    h = in_a
    pi = 0
    for li in range(n_layers):
        h = conv3x3(h, param_refs[pi], param_refs[pi + 1])
        if li < n_layers - 1:
            # BatchNorm2d training-mode forward (batch stats, biased var) + ReLU.
            # TODO(synk): running-stat buffer updates (training side effect) not modeled.
            g, bb = param_refs[pi + 2], param_refs[pi + 3]
            mu = jnp.mean(h, axis=1, keepdims=True)
            v = jnp.mean((h - mu) * (h - mu), axis=1, keepdims=True)
            h = (h - mu) * jax.lax.rsqrt(v + 1e-5)
            h = g[...] * h + bb[...]
            h = jnp.maximum(h, 0.0)
            pi += 4
        else:
            pi += 2

    # ---- affine coupling ------------------------------------------------------
    log_s = h[:half]
    t = h[half:]
    # log sigmoid(u) = min(u, 0) - log(1 + exp(-|u|))   (numerically safe)
    log_sig = jnp.minimum(log_s, 0.0) - jnp.log(1.0 + jnp.exp(-jnp.abs(log_s)))
    s = jnp.exp(log_sig)
    in_b = out_ref[pl.ds(b_off, half), :]
    out_ref[pl.ds(b_off, half), :] = (in_b + t) * s          # in-place half store

    ld_lane_ref[...] += jnp.sum(log_sig, axis=0, keepdims=True)   # (1, N)


# ----------------------------------------------------------------------------
# Block orchestration (layout glue: squeeze/unsqueeze, slab convert, one call)
# ----------------------------------------------------------------------------
def squeeze(x, fold):
    B, C, H, W = x.shape
    x = x.reshape(B, C, H // fold, fold, W // fold, fold)
    x = x.transpose(0, 1, 3, 5, 2, 4)
    return x.reshape(B, C * fold * fold, H // fold, W // fold)


def unsqueeze(x, fold):
    B, C, H, W = x.shape
    x = x.reshape(B, C // (fold * fold), fold, fold, H, W)
    x = x.transpose(0, 1, 4, 2, 5, 3)
    return x.reshape(B, C // (fold * fold), H * fold, W * fold)


def prepare_block_params(flows_params):
    """One-time packing: stack per-flow params over the flow axis and repack conv
    weights to bf16 (Cout, 9*Cin) with columns ordered (ky, kx, ci)."""
    n_layers = len(flows_params[0]["conv_w"])
    flat = []
    for li in range(n_layers):
        w = jnp.stack(
            [jnp.transpose(p["conv_w"][li], (0, 2, 3, 1))
             .reshape(p["conv_w"][li].shape[0], -1) for p in flows_params],
            axis=0).astype(jnp.bfloat16)                       # (n_flow, Cout, 9*Cin)
        b = jnp.stack([p["conv_b"][li].reshape(-1, 1) for p in flows_params], axis=0)
        flat += [w, b]
        if li < n_layers - 1:   # the last layer's BatchNorm is never applied
            flat.append(jnp.stack([p["bn_g"][li].reshape(-1, 1) for p in flows_params], axis=0))
            flat.append(jnp.stack([p["bn_b"][li].reshape(-1, 1) for p in flows_params], axis=0))
    return tuple(flat)


@functools.partial(jax.jit, static_argnums=(2,))
def block_forward(x, packed_params, fold):
    xs = squeeze(x, fold)
    B, C, H, W = xs.shape
    assert C % 2 == 0, "squeeze_dim must be even (fold >= 2 guarantees it)"
    N = B * H * W
    half = C // 2
    hw = H * W
    n_flow = int(packed_params[0].shape[0])
    n_layers = (len(packed_params) + 2) // 4

    slab = xs.transpose(1, 0, 2, 3).reshape(C, N)   # lane-dense, once per Block

    in_specs = [pl.BlockSpec((C, N), lambda f: (0, 0))]
    for a in packed_params:
        in_specs.append(pl.BlockSpec((None, a.shape[1], a.shape[2]),
                                     lambda f: (f, 0, 0)))
    out_specs = (pl.BlockSpec((C, N), lambda f: (0, 0)),
                 pl.BlockSpec((1, N), lambda f: (0, 0)),
                 pl.BlockSpec((1, 1), lambda f: (0, 0)))
    out_shape = (jax.ShapeDtypeStruct((C, N), jnp.float32),
                 jax.ShapeDtypeStruct((1, N), jnp.float32),
                 jax.ShapeDtypeStruct((1, 1), jnp.float32))

    # Scoped VMEM budget for the "full slab resident" strategy (defaults are
    # 16/32 MiB and would cap the fused kernel long before physical VMEM).
    max_k = max(int(a.shape[2]) for a in packed_params)
    max_co = max(int(a.shape[1]) for a in packed_params)
    est = 3 * 4 * C * N
    est += sum(2 * int(np.prod(a.shape[1:])) * a.dtype.itemsize for a in packed_params)
    est += 2 * 2 * max_k * N + 4 * 4 * max_co * N
    vmem_limit = int(min(max(4 * est, 32 << 20), 64 << 20))

    kernel = functools.partial(_block_kernel, n_layers=n_layers, H=H, W=W,
                               half=half, roll_sign=_roll_shift_sign())
    out_slab, ld_lane, ld_act = pl.pallas_call(
        kernel,
        grid_spec=pltpu.PrefetchScalarGridSpec(
            num_scalar_prefetch=0, grid=(n_flow,),
            in_specs=in_specs, out_specs=out_specs),
        out_shape=out_shape,
        compiler_params=pltpu.CompilerParams(
            dimension_semantics=("arbitrary",),    # flow steps are sequential
            vmem_limit_bytes=vmem_limit),
    )(slab, *packed_params)

    # Tiny per-batch reduction done outside the kernel (lane order = b*hw + ...)
    logdet = ld_lane.reshape(B, hw).sum(axis=1) + ld_act[0, 0]
    out = out_slab.reshape(C, B, H, W).transpose(1, 0, 2, 3)
    return unsqueeze(out, fold), logdet


# ----------------------------------------------------------------------------
# Deterministic parameter init (shapes follow AffineCoupling.__init__, affine=True)
# ----------------------------------------------------------------------------
def init_flow_params(key, squeeze_dim, hidden_channels):
    half = (squeeze_dim + 1) // 2          # math.ceil(in_channel / 2)
    vh = tuple(hidden_channels) + (squeeze_dim,)
    last = half
    conv_w, conv_b, bn_g, bn_b = [], [], [], []
    for h in vh:
        key, k1, k2, k3, k4 = jax.random.split(key, 5)
        conv_w.append(0.1 * jax.random.normal(k1, (h, last, 3, 3), jnp.float32))
        conv_b.append(0.05 * jax.random.normal(k2, (h,), jnp.float32))
        bn_g.append(1.0 + 0.1 * jax.random.normal(k3, (h,), jnp.float32))
        bn_b.append(0.1 * jax.random.normal(k4, (h,), jnp.float32))
        last = h
    return {"conv_w": conv_w, "conv_b": conv_b, "bn_g": bn_g, "bn_b": bn_b}, key


# ----------------------------------------------------------------------------
# Pure-JAX f32 reference (for correctness check)
# ----------------------------------------------------------------------------
def _sigmoid(z):
    return 1.0 / (1.0 + jnp.exp(-z))


def _ref_actnorm(x):
    B, C, H, W = x.shape
    flat = x.transpose(1, 0, 2, 3).reshape(C, -1)
    mean = flat.mean(axis=1)
    var = jnp.sum((flat - mean[:, None]) ** 2, axis=1) / (flat.shape[1] - 1)
    std = jnp.sqrt(var)
    scale = (1.0 / (std + 1e-6)).reshape(1, C, 1, 1)
    loc = (-mean).reshape(1, C, 1, 1)
    return scale * (x + loc), H * W * jnp.sum(jnp.log(jnp.abs(scale)))


def _ref_conv3x3(x, w, b):
    y = jax.lax.conv_general_dilated(
        x, w, (1, 1), ((1, 1), (1, 1)),
        dimension_numbers=("NCHW", "OIHW", "NCHW"),
        precision=jax.lax.Precision.HIGHEST)
    return y + b.reshape(1, -1, 1, 1)


def _ref_bn_relu(x, g, beta):
    mean = x.mean(axis=(0, 2, 3), keepdims=True)
    var = ((x - mean) ** 2).mean(axis=(0, 2, 3), keepdims=True)
    y = (x - mean) * jax.lax.rsqrt(var + 1e-5)
    y = g.reshape(1, -1, 1, 1) * y + beta.reshape(1, -1, 1, 1)
    return jnp.maximum(y, 0.0)


def _ref_flow(x, p, mask_swap):
    y, ld_act = _ref_actnorm(x)
    C = y.shape[1]
    half = C // 2
    in_a, in_b = y[:, :half], y[:, half:]
    if mask_swap:
        in_a, in_b = in_b, in_a
    h = in_a
    for i in range(len(p["conv_w"]) - 1):
        h = _ref_conv3x3(h, p["conv_w"][i], p["conv_b"][i])
        h = _ref_bn_relu(h, p["bn_g"][i], p["bn_b"][i])
    h = _ref_conv3x3(h, p["conv_w"][-1], p["conv_b"][-1])
    log_s, t = h[:, :C // 2], h[:, C // 2:]
    s = _sigmoid(log_s)
    out_b = (in_b + t) * s
    ld_coup = jnp.sum(jnp.log(jnp.abs(s)).reshape(x.shape[0], -1), axis=1)
    out = jnp.concatenate([out_b, in_a] if mask_swap else [in_a, out_b], axis=1)
    return out, ld_act + ld_coup


def ref_block_forward(x, flows_params, fold):
    out = squeeze(x, fold)
    logdet = jnp.zeros((), jnp.float32)
    for i, p in enumerate(flows_params):
        out, det = _ref_flow(out, p, mask_swap=bool(i % 2))
        logdet = logdet + det
    return unsqueeze(out, fold), logdet


# ----------------------------------------------------------------------------
if __name__ == "__main__":
    key = jax.random.PRNGKey(0)
    B, Cin, H, W = 2, 4, 16, 16
    fold = 2                      # squeeze_fold
    n_flow = 2
    hidden_channels = (8,)
    squeeze_dim = Cin * fold * fold

    key, kx = jax.random.split(key)
    x = jax.random.normal(kx, (B, Cin, H, W), jnp.float32)

    flows_params = []
    for _ in range(n_flow):
        p, key = init_flow_params(key, squeeze_dim, hidden_channels)
        flows_params.append(p)

    packed = prepare_block_params(flows_params)   # one-time bf16 repack + stacking
    _roll_shift_sign()                            # resolve roll convention once

    out, logdet = block_forward(x, packed, fold)
    out, logdet = jax.block_until_ready((out, logdet))

    ref_out, ref_ld = ref_block_forward(x, flows_params, fold)
    # bf16 MXU operands (f32 accumulation) vs a pure-f32 reference => bf16-level tolerance.
    np.testing.assert_allclose(np.asarray(out), np.asarray(ref_out), rtol=2e-2, atol=2e-2)
    np.testing.assert_allclose(np.asarray(logdet), np.asarray(ref_ld), rtol=1e-2, atol=1e-1)
    assert out.shape == (B, Cin, H, W)
    assert logdet.shape == (B,)
    print("KERNEL_OK")
</pallas_src>

<mosaic_0001>
module attributes {stable_mosaic.version = 11 : i64} {
  func.func @_roll_probe_kernel(%arg0: memref<1x128xf32, #tpu.memory_space<vmem>>, %arg1: memref<1x128xf32, #tpu.memory_space<vmem>>) attributes {dimension_semantics = [], scalar_prefetch = 0 : i64, scratch_operands = 0 : i64, tpu.core_type = #tpu.core_type<tc>} {
    %c0 = arith.constant 0 : index
    %c0_0 = arith.constant 0 : index
    %0 = vector.load %arg0[%c0, %c0_0] : memref<1x128xf32, #tpu.memory_space<vmem>>, vector<1x128xf32>
    %c1_i32 = arith.constant 1 : i32
    %1 = tpu.dynamic_rotate %0 by %c1_i32 dim 1 : vector<1x128xf32>, i32 -> vector<1x128xf32>
    %c0_1 = arith.constant 0 : index
    %c0_2 = arith.constant 0 : index
    %2 = vector.load %arg1[%c0_1, %c0_2] : memref<1x128xf32, #tpu.memory_space<vmem>>, vector<1x128xf32>
    tpu.vector_store %arg1[%c0_1, %c0_2], %1 {strides = array<i32>} : memref<1x128xf32, #tpu.memory_space<vmem>>, vector<1x128xf32>,
    return
  }
}

</mosaic_0001>

<llo_original>
// kernel: tpu_custom_call.1
$region0: #{tpu_custom_call.1}
  #allocation0 [shape = 'u32[]', space=smem, size = 0x4, offset = 0x4, fixed_abs, tag = 'smem constant byte address 0x4 - core index']
  #allocation1 [shape = 'u32[144,128]{1,0:T(1,128)}', space=vmem, size = 0x12000, scoped, tag = 'internal scratch']
  %s0 = inlined_call_operand.hbm [shape: f32[1,128], index: 0, kind: input, shape index: {}]
  %s1 = inlined_call_operand.hbm [shape: f32[1,128], index: 1, kind: output, shape index: {}]
  %s2 = sld [smem:[#allocation0]]
  $region18: #{tpu_custom_call.1} parent=0
    _
  %s4 = ssub.s32 1, %s2
  %s5 = scalar_select 0, %s4, %s2
  $region1: #{tpu_custom_call.1} parent=0
    #allocation2 [shape = 'u8[512]{0}', space=vmem, size = 0x400, scoped, tag = 'input window, operand 0, single buffered']
    #allocation3 [shape = 's32[1]{0}', space=sflag, size = 0x4, scoped, tag = 'scoped memory for tpu_custom_call.1']
    #allocation4 [shape = 's32[1]{0}', space=sflag, size = 0x4, scoped, tag = 'scoped memory for tpu_custom_call.1']
    #allocation5 [shape = 'u8[512]{0}', space=vmem, size = 0x400, scoped, tag = 'output window, operand 0, single buffered']
    %6 = vsyncpa [#allocation3], 0
    %7 = vsyncpa [#allocation4], 0
    // Predicated region
    $region2: #{tpu_custom_call.1} parent=1 // pred_check
      _
    $region3: #{tpu_custom_call.1} parent=1 // pred_check_branch
      %9 = sbr.rel (0) target = $region5
    $region4: #{tpu_custom_call.1} parent=1 // pred_region
      %s11 = ssub.s32 16, 16
      %12 = vsyncadd [#allocation3], %s11
      %s14 = sshll.u32 [#allocation2], 4
      %s15 = int_to_ptr.vmem [resolvable:$true] %s14
      %17 = dma.hbm_to_vmem [thread:$0]  %s0, 16, %s15, [#allocation3]
    $region5: #{tpu_custom_call.1} parent=1 // pred_fallthru
      _
    // Predicated region
    $region6: #{tpu_custom_call.1} parent=1 // pred_check
      _
    $region7: #{tpu_custom_call.1} parent=1 // pred_check_branch
      %19 = sbr.rel (0) target = $region9
    $region8: #{tpu_custom_call.1} parent=1 // pred_region
      %20 = dma.done [#allocation3], 16
    $region9: #{tpu_custom_call.1} parent=1 // pred_fallthru
      _
    %v21 = vld [vmem:[#allocation2] sm:$0x1]
    %22 = vrot.lane.b32.xlu0 %v21, 1
    %v23 = vpop.permute.xlu0 %22
    %24 = vst [vmem:[#allocation5] sm:$0x1] %v23
    // Predicated region
    $region10: #{tpu_custom_call.1} parent=1 // pred_check
      _
    $region11: #{tpu_custom_call.1} parent=1 // pred_check_branch
      %26 = sbr.rel (0) target = $region13
    $region12: #{tpu_custom_call.1} parent=1 // pred_region
      %s28 = ssub.s32 16, 16
      %29 = vsyncadd [#allocation4], %s28
      %s31 = sshll.u32 [#allocation5], 4
      %s32 = int_to_ptr.vmem [resolvable:$true] %s31
      %34 = dma.vmem_to_hbm [thread:$0]  %s32, 16, %s1, [#allocation4]
    $region13: #{tpu_custom_call.1} parent=1 // pred_fallthru
      _
    // Predicated region
    $region14: #{tpu_custom_call.1} parent=1 // pred_check
      _
    $region15: #{tpu_custom_call.1} parent=1 // pred_check_branch
      %36 = sbr.rel (0) target = $region17
    $region16: #{tpu_custom_call.1} parent=1 // pred_region
      %37 = dma.done [#allocation4], 16
    $region17: #{tpu_custom_call.1} parent=1 // pred_fallthru
      _
    %38 = vsyncpa [#allocation3], 1
    %39 = vsyncpa [#allocation4], 1

</llo_original>
